<compile_context>
chip_gen: v6e
topology: v6e:2x2x1
jax: 0.10.0
libtpu: 0.0.40
codegen_flags: <defaults>
</compile_context>

<pallas_src>
import jax
import jax.numpy as jnp
from jax import lax
from jax.experimental import pallas as pl
from jax.experimental.pallas import tpu as pltpu


def _pick_row_tile(H, W, max_rows):
    """Largest divisor of H (<= max_rows) whose tile keeps the lane dim 128-aligned
    (TH*W % 128 == 0). Falls back to the full image (always legal)."""
    best = None
    for th in range(1, min(H, max_rows) + 1):
        if H % th == 0 and (th * W) % 128 == 0:
            best = th
    return best if best is not None else H


def _make_segnet_kernel(TH, W, NT):
    """Kernel closure over the static row-tile height TH, image width W, #tiles NT."""
    THW = TH * W

    def kernel(x_ref, w1_ref, b1_ref, w2_ref, b2_ref, o_ref):
        # x_ref : (1, Cin, (H+2)*W + 2) bf16   whole padded per-batch image, channel-major
        # w1_ref: (Cmid, 9*Cin) bf16           fused 3x3 weights (contraction axis packed)
        # b1_ref: (Cmid, 1) f32
        # w2_ref: (Ncls, Cmid) bf16            1x1 head, pre-transposed
        # b2_ref: (Ncls, 1) f32
        # o_ref : (1, Ncls, H*W) bf16          channel-major, lane-dense spatial axis

        # Column masks for 'same' padding (hoisted out of the tile loop).  The width
        # halo is never materialized; the wrap-around lanes of the dx==0 / dx==2 taps
        # are zeroed instead.
        col = lax.broadcasted_iota(jnp.int32, (1, THW), 1) % W
        not_left = col != 0           # invalid lanes of the dx == 0 taps (output col 0)
        not_right = col != (W - 1)    # invalid lanes of the dx == 2 taps (output col W-1)

        for t in range(NT):           # static unroll: all slices below are static
            base = t * THW            # multiple of 128 -> aligned loads/stores

            # Build the stacked tap matrix (9*Cin, THW): contraction axis = 9 taps x Cin.
            tap_rows = []
            for dy in range(3):
                for dx in range(3):
                    s = base + dy * W + dx
                    tap = x_ref[0, :, s:s + THW]          # (Cin, THW) bf16, lane-dense
                    if dx == 0:
                        tap = jnp.where(not_left, tap, 0)
                    elif dx == 2:
                        tap = jnp.where(not_right, tap, 0)
                    tap_rows.append(tap)
            taps = jnp.concatenate(tap_rows, axis=0)      # (9*Cin, THW) bf16

            # Fused 3x3 conv: ONE MXU pass, K = 9*Cin, f32 accumulation.
            h = jnp.dot(w1_ref[...], taps, preferred_element_type=jnp.float32)
            h = jnp.maximum(h + b1_ref[...], 0.0)         # bias + ReLU in f32, (Cmid, THW)

            # 1x1 head, channel-major: already lane-dense, no transpose needed.
            # NOTE: h is re-quantized to bf16 for the MXU (one extra quantization point
            # vs the f32 PyTorch net); the pure-JAX reference applies the same rounding.
            y = jnp.dot(w2_ref[...], h.astype(jnp.bfloat16),
                        preferred_element_type=jnp.float32) + b2_ref[...]

            o_ref[0, :, base:base + THW] = y.astype(o_ref.dtype)   # lane-dense bf16 store

    return kernel


def segmentation_forward(x_nchw, w1, b1, w2, b2, *, max_tile_rows=None):
    """Forward pass of the tiny segmentation net (Conv3x3 'same' -> ReLU -> Conv1x1).

    x_nchw: (B, Cin, H, W) float32   (PyTorch conv layout)
    w1:     (3, 3, Cin, Cmid)  -- 3x3 conv weight (HWIO)
    b1:     (Cmid,)
    w2:     (Cmid, Ncls)       -- 1x1 conv weight
    b2:     (Ncls,)
    returns (B, Ncls, H, W) bf16 logits in NCHW (upcast outside if f32 is required).
    """
    B, Cin, H, W = x_nchw.shape
    Cmid = w1.shape[-1]
    Ncls = w2.shape[-1]

    if max_tile_rows is None:
        # Keep the per-tile f32 temporaries (Cmid x THW) around <= ~2 MB.
        max_tile_rows = max(1, 32768 // W)
    TH = _pick_row_tile(H, W, max_tile_rows)
    NT = H // TH
    PL = (H + 2) * W + 2              # padded flattened length: row halos + +/-1 guards

    # bf16 data path, native channel-major layout, flattened spatial; one pad adds the
    # top/bottom halo rows plus the +/-1 guard elements used by the corner taps.
    xg = jnp.pad(x_nchw.astype(jnp.bfloat16).reshape(B, Cin, H * W),
                 ((0, 0), (0, 0), (W + 1, W + 1)))                   # (B, Cin, PL)

    # Pre-pack weights into their final kernel shapes (VMEM-resident, constant-index).
    # w1_packed[m, (dy*3+dx)*Cin + c] = w1[dy, dx, c, m]
    w1_p = jnp.transpose(w1, (3, 0, 1, 2)).reshape(Cmid, 9 * Cin).astype(jnp.bfloat16)
    w2_t = jnp.transpose(w2).astype(jnp.bfloat16)                    # (Ncls, Cmid)
    b1_c = b1.reshape(Cmid, 1).astype(jnp.float32)
    b2_c = b2.reshape(Ncls, 1).astype(jnp.float32)

    kernel = _make_segnet_kernel(TH, W, NT)

    out = pl.pallas_call(
        kernel,
        out_shape=jax.ShapeDtypeStruct((B, Ncls, H * W), jnp.bfloat16),
        grid_spec=pltpu.PrefetchScalarGridSpec(
            num_scalar_prefetch=0,
            grid=(B,),
            in_specs=[
                pl.BlockSpec((1, Cin, PL), lambda b: (b, 0, 0)),
                pl.BlockSpec((Cmid, 9 * Cin), lambda b: (0, 0)),
                pl.BlockSpec((Cmid, 1), lambda b: (0, 0)),
                pl.BlockSpec((Ncls, Cmid), lambda b: (0, 0)),
                pl.BlockSpec((Ncls, 1), lambda b: (0, 0)),
            ],
            out_specs=pl.BlockSpec((1, Ncls, H * W), lambda b: (b, 0, 0)),
        ),
        compiler_params=pltpu.CompilerParams(
            dimension_semantics=("parallel",),       # B >= 2 keeps both v7x TCs busy
            vmem_limit_bytes=32 * 1024 * 1024,       # footprint is KBs here; safe on all gens
        ),
    )(xg, w1_p, b1_c, w2_t, b2_c)

    # Output is already channel-major: just un-flatten the spatial axis -> NCHW.
    return out.reshape(B, Ncls, H, W)


def reference_forward(x_nchw, w1, b1, w2, b2):
    """Pure-JAX reference using the same bf16 quantization points as the kernel."""
    f32 = jnp.float32
    xb = x_nchw.astype(jnp.bfloat16).astype(f32)
    w1b = w1.astype(jnp.bfloat16).astype(f32)
    w2b = w2.astype(jnp.bfloat16).astype(f32)
    h = lax.conv_general_dilated(
        xb, w1b, window_strides=(1, 1), padding="SAME",
        dimension_numbers=("NCHW", "HWIO", "NCHW"))
    h = jnp.maximum(h + b1[None, :, None, None], 0.0)
    hq = h.astype(jnp.bfloat16).astype(f32)
    y = jnp.einsum("bchw,cn->bnhw", hq, w2b) + b2[None, :, None, None]
    return y


if __name__ == "__main__":
    key = jax.random.PRNGKey(0)
    k_x, k_w1, k_b1, k_w2, k_b2 = jax.random.split(key, 5)

    B, Cin, H, W = 2, 4, 16, 16
    Cmid, Ncls = 16, 3

    x = jax.random.normal(k_x, (B, Cin, H, W), dtype=jnp.float32)
    w1 = jax.random.normal(k_w1, (3, 3, Cin, Cmid), dtype=jnp.float32) * 0.1
    b1 = jax.random.normal(k_b1, (Cmid,), dtype=jnp.float32) * 0.1
    w2 = jax.random.normal(k_w2, (Cmid, Ncls), dtype=jnp.float32) * 0.1
    b2 = jax.random.normal(k_b2, (Ncls,), dtype=jnp.float32) * 0.1

    # max_tile_rows=8 -> TH=8, NT=2: exercises the in-kernel row-tiled path.
    y = segmentation_forward(x, w1, b1, w2, b2, max_tile_rows=8)
    y = jax.block_until_ready(y)

    y_ref = jax.block_until_ready(reference_forward(x, w1, b1, w2, b2))
    assert y.shape == (B, Ncls, H, W), y.shape
    y_f32 = y.astype(jnp.float32)
    max_err = float(jnp.max(jnp.abs(y_f32 - y_ref)))
    # Kernel stores bf16 logits; tolerance covers the final bf16 rounding (~1e-3 here).
    assert jnp.allclose(y_f32, y_ref, atol=1e-2, rtol=1e-2), max_err

    print("KERNEL_OK")
</pallas_src>

<mosaic_0001>
module attributes {stable_mosaic.version = 11 : i64} {
  func.func @kernel(%arg0: i32, %arg1: memref<1x4x290xbf16, #tpu.memory_space<vmem>>, %arg2: memref<16x36xbf16, #tpu.memory_space<vmem>>, %arg3: memref<16x1xf32, #tpu.memory_space<vmem>>, %arg4: memref<3x16xbf16, #tpu.memory_space<vmem>>, %arg5: memref<3x1xf32, #tpu.memory_space<vmem>>, %arg6: memref<1x3x256xbf16, #tpu.memory_space<vmem>>) attributes {dimension_semantics = [#tpu.dimension_semantics<parallel>], iteration_bounds = array<i64: 2>, scalar_prefetch = 0 : i64, scratch_operands = 0 : i64, tpu.core_type = #tpu.core_type<tc>, window_params = [{transform_indices = @transform_0, window_bounds = array<i64: 1, 4, 290>}, {pipeline_mode = #tpu.pipeline_mode<synchronous>, transform_indices = @transform_1, window_bounds = array<i64: 16, 36>}, {pipeline_mode = #tpu.pipeline_mode<synchronous>, transform_indices = @transform_2, window_bounds = array<i64: 16, 1>}, {pipeline_mode = #tpu.pipeline_mode<synchronous>, transform_indices = @transform_3, window_bounds = array<i64: 3, 16>}, {pipeline_mode = #tpu.pipeline_mode<synchronous>, transform_indices = @transform_4, window_bounds = array<i64: 3, 1>}, {transform_indices = @transform_5, window_bounds = array<i64: 1, 3, 256>}]} {
    %0 = tpu.iota {dimensions = array<i32: 1>} : vector<1x128xi32>
    %c16_i32 = arith.constant 16 : i32
    %c0_i32 = arith.constant 0 : i32
    %1 = arith.cmpi eq, %c16_i32, %c0_i32 : i32
    %c1_i32 = arith.constant 1 : i32
    %2 = arith.select %1, %c1_i32, %c16_i32 : i32
    %3 = vector.broadcast %2 : i32 to vector<1x128xi32>
    %4 = arith.remsi %0, %3 : vector<1x128xi32>
    %c0_i32_0 = arith.constant 0 : i32
    %5 = vector.broadcast %c0_i32_0 : i32 to vector<1x128xi32>
    %6 = arith.cmpi ne, %4, %5 : vector<1x128xi32>
    %c0_i32_1 = arith.constant 0 : i32
    %7 = vector.broadcast %c0_i32_1 : i32 to vector<1x128xi32>
    %8 = arith.cmpi slt, %4, %7 : vector<1x128xi32>
    %c0_i32_2 = arith.constant 0 : i32
    %9 = arith.cmpi slt, %2, %c0_i32_2 : i32
    %10 = vector.broadcast %9 : i1 to vector<1x128xi1>
    %11 = vector.broadcast %10 : vector<1x128xi1> to vector<1x128xi1>
    %12 = arith.xori %8, %11 : vector<1x128xi1>
    %13 = arith.andi %12, %6 : vector<1x128xi1>
    %14 = vector.broadcast %2 : i32 to vector<1x128xi32>
    %15 = arith.addi %4, %14 : vector<1x128xi32>
    %16 = arith.select %13, %15, %4 : vector<1x128xi1>, vector<1x128xi32>
    %c0_i32_3 = arith.constant 0 : i32
    %17 = vector.broadcast %c0_i32_3 : i32 to vector<1x128xi32>
    %18 = arith.cmpi ne, %16, %17 : vector<1x128xi32>
    %c15_i32 = arith.constant 15 : i32
    %19 = vector.broadcast %c15_i32 : i32 to vector<1x128xi32>
    %20 = arith.cmpi ne, %16, %19 : vector<1x128xi32>
    %c0 = arith.constant 0 : index
    %c0_4 = arith.constant 0 : index
    %c0_5 = arith.constant 0 : index
    %21 = vector.load %arg1[%c0, %c0_4, %c0_5] : memref<1x4x290xbf16, #tpu.memory_space<vmem>>, vector<1x4x128xbf16>
    %22 = vector.shape_cast %21 : vector<1x4x128xbf16> to vector<4x128xbf16>
    %c0_i32_6 = arith.constant 0 : i32
    %23 = arith.sitofp %c0_i32_6 : i32 to bf16
    %24 = vector.shape_cast %18 : vector<1x128xi1> to vector<1x128xi1>
    %25 = vector.broadcast %24 : vector<1x128xi1> to vector<4x128xi1>
    %26 = vector.broadcast %23 : bf16 to vector<4x128xbf16>
    %27 = arith.select %25, %22, %26 : vector<4x128xi1>, vector<4x128xbf16>
    %c0_7 = arith.constant 0 : index
    %c0_8 = arith.constant 0 : index
    %c1 = arith.constant 1 : index
    %28 = vector.load %arg1[%c0_7, %c0_8, %c1] : memref<1x4x290xbf16, #tpu.memory_space<vmem>>, vector<1x4x128xbf16>
    %29 = vector.shape_cast %28 : vector<1x4x128xbf16> to vector<4x128xbf16>
    %c0_9 = arith.constant 0 : index
    %c0_10 = arith.constant 0 : index
    %c2 = arith.constant 2 : index
    %30 = vector.load %arg1[%c0_9, %c0_10, %c2] : memref<1x4x290xbf16, #tpu.memory_space<vmem>>, vector<1x4x128xbf16>
    %31 = vector.shape_cast %30 : vector<1x4x128xbf16> to vector<4x128xbf16>
    %c0_i32_11 = arith.constant 0 : i32
    %32 = arith.sitofp %c0_i32_11 : i32 to bf16
    %33 = vector.shape_cast %20 : vector<1x128xi1> to vector<1x128xi1>
    %34 = vector.broadcast %33 : vector<1x128xi1> to vector<4x128xi1>
    %35 = vector.broadcast %32 : bf16 to vector<4x128xbf16>
    %36 = arith.select %34, %31, %35 : vector<4x128xi1>, vector<4x128xbf16>
    %c0_12 = arith.constant 0 : index
    %c0_13 = arith.constant 0 : index
    %c16 = arith.constant 16 : index
    %37 = vector.load %arg1[%c0_12, %c0_13, %c16] : memref<1x4x290xbf16, #tpu.memory_space<vmem>>, vector<1x4x128xbf16>
    %38 = vector.shape_cast %37 : vector<1x4x128xbf16> to vector<4x128xbf16>
    %c0_i32_14 = arith.constant 0 : i32
    %39 = arith.sitofp %c0_i32_14 : i32 to bf16
    %40 = vector.shape_cast %18 : vector<1x128xi1> to vector<1x128xi1>
    %41 = vector.broadcast %40 : vector<1x128xi1> to vector<4x128xi1>
    %42 = vector.broadcast %39 : bf16 to vector<4x128xbf16>
    %43 = arith.select %41, %38, %42 : vector<4x128xi1>, vector<4x128xbf16>
    %c0_15 = arith.constant 0 : index
    %c0_16 = arith.constant 0 : index
    %c17 = arith.constant 17 : index
    %44 = vector.load %arg1[%c0_15, %c0_16, %c17] : memref<1x4x290xbf16, #tpu.memory_space<vmem>>, vector<1x4x128xbf16>
    %45 = vector.shape_cast %44 : vector<1x4x128xbf16> to vector<4x128xbf16>
    %c0_17 = arith.constant 0 : index
    %c0_18 = arith.constant 0 : index
    %c18 = arith.constant 18 : index
    %46 = vector.load %arg1[%c0_17, %c0_18, %c18] : memref<1x4x290xbf16, #tpu.memory_space<vmem>>, vector<1x4x128xbf16>
    %47 = vector.shape_cast %46 : vector<1x4x128xbf16> to vector<4x128xbf16>
    %c0_i32_19 = arith.constant 0 : i32
    %48 = arith.sitofp %c0_i32_19 : i32 to bf16
    %49 = vector.shape_cast %20 : vector<1x128xi1> to vector<1x128xi1>
    %50 = vector.broadcast %49 : vector<1x128xi1> to vector<4x128xi1>
    %51 = vector.broadcast %48 : bf16 to vector<4x128xbf16>
    %52 = arith.select %50, %47, %51 : vector<4x128xi1>, vector<4x128xbf16>
    %c0_20 = arith.constant 0 : index
    %c0_21 = arith.constant 0 : index
    %c32 = arith.constant 32 : index
    %53 = vector.load %arg1[%c0_20, %c0_21, %c32] : memref<1x4x290xbf16, #tpu.memory_space<vmem>>, vector<1x4x128xbf16>
    %54 = vector.shape_cast %53 : vector<1x4x128xbf16> to vector<4x128xbf16>
    %c0_i32_22 = arith.constant 0 : i32
    %55 = arith.sitofp %c0_i32_22 : i32 to bf16
    %56 = vector.shape_cast %18 : vector<1x128xi1> to vector<1x128xi1>
    %57 = vector.broadcast %56 : vector<1x128xi1> to vector<4x128xi1>
    %58 = vector.broadcast %55 : bf16 to vector<4x128xbf16>
    %59 = arith.select %57, %54, %58 : vector<4x128xi1>, vector<4x128xbf16>
    %c0_23 = arith.constant 0 : index
    %c0_24 = arith.constant 0 : index
    %c33 = arith.constant 33 : index
    %60 = vector.load %arg1[%c0_23, %c0_24, %c33] : memref<1x4x290xbf16, #tpu.memory_space<vmem>>, vector<1x4x128xbf16>
    %61 = vector.shape_cast %60 : vector<1x4x128xbf16> to vector<4x128xbf16>
    %c0_25 = arith.constant 0 : index
    %c0_26 = arith.constant 0 : index
    %c34 = arith.constant 34 : index
    %62 = vector.load %arg1[%c0_25, %c0_26, %c34] : memref<1x4x290xbf16, #tpu.memory_space<vmem>>, vector<1x4x128xbf16>
    %63 = vector.shape_cast %62 : vector<1x4x128xbf16> to vector<4x128xbf16>
    %c0_i32_27 = arith.constant 0 : i32
    %64 = arith.sitofp %c0_i32_27 : i32 to bf16
    %65 = vector.shape_cast %20 : vector<1x128xi1> to vector<1x128xi1>
    %66 = vector.broadcast %65 : vector<1x128xi1> to vector<4x128xi1>
    %67 = vector.broadcast %64 : bf16 to vector<4x128xbf16>
    %68 = arith.select %66, %63, %67 : vector<4x128xi1>, vector<4x128xbf16>
    %69 = tpu.concatenate %27, %29, %36, %43, %45, %52, %59, %61, %68 in 0 : vector<4x128xbf16>, vector<4x128xbf16>, vector<4x128xbf16>, vector<4x128xbf16>, vector<4x128xbf16>, vector<4x128xbf16>, vector<4x128xbf16>, vector<4x128xbf16>, vector<4x128xbf16> -> vector<36x128xbf16>
    %c0_28 = arith.constant 0 : index
    %c0_29 = arith.constant 0 : index
    %70 = vector.load %arg2[%c0_28, %c0_29] : memref<16x36xbf16, #tpu.memory_space<vmem>>, vector<16x36xbf16>
    %cst = arith.constant dense<0.000000e+00> : vector<16x128xf32>
    %71 = tpu.matmul %70, %69, %cst {dimension_numbers = #tpu.dot_dimension_numbers<[1], [0], [0], [1], [0, 0, 1, 1], [], []>} : vector<16x36xbf16>, vector<36x128xbf16>, vector<16x128xf32> -> vector<16x128xf32>
    %c0_30 = arith.constant 0 : index
    %c0_31 = arith.constant 0 : index
    %72 = vector.load %arg3[%c0_30, %c0_31] : memref<16x1xf32, #tpu.memory_space<vmem>>, vector<16x1xf32>
    %73 = vector.broadcast %72 : vector<16x1xf32> to vector<16x128xf32>
    %74 = arith.addf %71, %73 : vector<16x128xf32>
    %cst_32 = arith.constant 0.000000e+00 : f32
    %75 = vector.broadcast %cst_32 : f32 to vector<16x128xf32>
    %76 = arith.maximumf %74, %75 : vector<16x128xf32>
    %c0_33 = arith.constant 0 : index
    %c0_34 = arith.constant 0 : index
    %77 = vector.load %arg4[%c0_33, %c0_34] : memref<3x16xbf16, #tpu.memory_space<vmem>>, vector<3x16xbf16>
    %78 = arith.truncf %76 : vector<16x128xf32> to vector<16x128xbf16>
    %cst_35 = arith.constant dense<0.000000e+00> : vector<3x128xf32>
    %79 = tpu.matmul %77, %78, %cst_35 {dimension_numbers = #tpu.dot_dimension_numbers<[1], [0], [0], [1], [0, 0, 1, 1], [], []>} : vector<3x16xbf16>, vector<16x128xbf16>, vector<3x128xf32> -> vector<3x128xf32>
    %c0_36 = arith.constant 0 : index
    %c0_37 = arith.constant 0 : index
    %80 = vector.load %arg5[%c0_36, %c0_37] : memref<3x1xf32, #tpu.memory_space<vmem>>, vector<3x1xf32>
    %81 = vector.broadcast %80 : vector<3x1xf32> to vector<3x128xf32>
    %82 = arith.addf %79, %81 : vector<3x128xf32>
    %83 = arith.truncf %82 : vector<3x128xf32> to vector<3x128xbf16>
    %c0_38 = arith.constant 0 : index
    %c0_39 = arith.constant 0 : index
    %c0_40 = arith.constant 0 : index
    %84 = vector.load %arg6[%c0_38, %c0_39, %c0_40] : memref<1x3x256xbf16, #tpu.memory_space<vmem>>, vector<1x3x128xbf16>
    %85 = vector.shape_cast %84 : vector<1x3x128xbf16> to vector<3x128xbf16>
    %86 = vector.shape_cast %83 : vector<3x128xbf16> to vector<1x3x128xbf16>
    tpu.vector_store %arg6[%c0_38, %c0_39, %c0_40], %86 {strides = array<i32>} : memref<1x3x256xbf16, #tpu.memory_space<vmem>>, vector<1x3x128xbf16>,
    %c0_41 = arith.constant 0 : index
    %c0_42 = arith.constant 0 : index
    %c128 = arith.constant 128 : index
    %87 = vector.load %arg1[%c0_41, %c0_42, %c128] : memref<1x4x290xbf16, #tpu.memory_space<vmem>>, vector<1x4x128xbf16>
    %88 = vector.shape_cast %87 : vector<1x4x128xbf16> to vector<4x128xbf16>
    %c0_i32_43 = arith.constant 0 : i32
    %89 = arith.sitofp %c0_i32_43 : i32 to bf16
    %90 = vector.shape_cast %18 : vector<1x128xi1> to vector<1x128xi1>
    %91 = vector.broadcast %90 : vector<1x128xi1> to vector<4x128xi1>
    %92 = vector.broadcast %89 : bf16 to vector<4x128xbf16>
    %93 = arith.select %91, %88, %92 : vector<4x128xi1>, vector<4x128xbf16>
    %c0_44 = arith.constant 0 : index
    %c0_45 = arith.constant 0 : index
    %c129 = arith.constant 129 : index
    %94 = vector.load %arg1[%c0_44, %c0_45, %c129] : memref<1x4x290xbf16, #tpu.memory_space<vmem>>, vector<1x4x128xbf16>
    %95 = vector.shape_cast %94 : vector<1x4x128xbf16> to vector<4x128xbf16>
    %c0_46 = arith.constant 0 : index
    %c0_47 = arith.constant 0 : index
    %c130 = arith.constant 130 : index
    %96 = vector.load %arg1[%c0_46, %c0_47, %c130] : memref<1x4x290xbf16, #tpu.memory_space<vmem>>, vector<1x4x128xbf16>
    %97 = vector.shape_cast %96 : vector<1x4x128xbf16> to vector<4x128xbf16>
    %c0_i32_48 = arith.constant 0 : i32
    %98 = arith.sitofp %c0_i32_48 : i32 to bf16
    %99 = vector.shape_cast %20 : vector<1x128xi1> to vector<1x128xi1>
    %100 = vector.broadcast %99 : vector<1x128xi1> to vector<4x128xi1>
    %101 = vector.broadcast %98 : bf16 to vector<4x128xbf16>
    %102 = arith.select %100, %97, %101 : vector<4x128xi1>, vector<4x128xbf16>
    %c0_49 = arith.constant 0 : index
    %c0_50 = arith.constant 0 : index
    %c144 = arith.constant 144 : index
    %103 = vector.load %arg1[%c0_49, %c0_50, %c144] : memref<1x4x290xbf16, #tpu.memory_space<vmem>>, vector<1x4x128xbf16>
    %104 = vector.shape_cast %103 : vector<1x4x128xbf16> to vector<4x128xbf16>
    %c0_i32_51 = arith.constant 0 : i32
    %105 = arith.sitofp %c0_i32_51 : i32 to bf16
    %106 = vector.shape_cast %18 : vector<1x128xi1> to vector<1x128xi1>
    %107 = vector.broadcast %106 : vector<1x128xi1> to vector<4x128xi1>
    %108 = vector.broadcast %105 : bf16 to vector<4x128xbf16>
    %109 = arith.select %107, %104, %108 : vector<4x128xi1>, vector<4x128xbf16>
    %c0_52 = arith.constant 0 : index
    %c0_53 = arith.constant 0 : index
    %c145 = arith.constant 145 : index
    %110 = vector.load %arg1[%c0_52, %c0_53, %c145] : memref<1x4x290xbf16, #tpu.memory_space<vmem>>, vector<1x4x128xbf16>
    %111 = vector.shape_cast %110 : vector<1x4x128xbf16> to vector<4x128xbf16>
    %c0_54 = arith.constant 0 : index
    %c0_55 = arith.constant 0 : index
    %c146 = arith.constant 146 : index
    %112 = vector.load %arg1[%c0_54, %c0_55, %c146] : memref<1x4x290xbf16, #tpu.memory_space<vmem>>, vector<1x4x128xbf16>
    %113 = vector.shape_cast %112 : vector<1x4x128xbf16> to vector<4x128xbf16>
    %c0_i32_56 = arith.constant 0 : i32
    %114 = arith.sitofp %c0_i32_56 : i32 to bf16
    %115 = vector.shape_cast %20 : vector<1x128xi1> to vector<1x128xi1>
    %116 = vector.broadcast %115 : vector<1x128xi1> to vector<4x128xi1>
    %117 = vector.broadcast %114 : bf16 to vector<4x128xbf16>
    %118 = arith.select %116, %113, %117 : vector<4x128xi1>, vector<4x128xbf16>
    %c0_57 = arith.constant 0 : index
    %c0_58 = arith.constant 0 : index
    %c160 = arith.constant 160 : index
    %119 = vector.load %arg1[%c0_57, %c0_58, %c160] : memref<1x4x290xbf16, #tpu.memory_space<vmem>>, vector<1x4x128xbf16>
    %120 = vector.shape_cast %119 : vector<1x4x128xbf16> to vector<4x128xbf16>
    %c0_i32_59 = arith.constant 0 : i32
    %121 = arith.sitofp %c0_i32_59 : i32 to bf16
    %122 = vector.shape_cast %18 : vector<1x128xi1> to vector<1x128xi1>
    %123 = vector.broadcast %122 : vector<1x128xi1> to vector<4x128xi1>
    %124 = vector.broadcast %121 : bf16 to vector<4x128xbf16>
    %125 = arith.select %123, %120, %124 : vector<4x128xi1>, vector<4x128xbf16>
    %c0_60 = arith.constant 0 : index
    %c0_61 = arith.constant 0 : index
    %c161 = arith.constant 161 : index
    %126 = vector.load %arg1[%c0_60, %c0_61, %c161] : memref<1x4x290xbf16, #tpu.memory_space<vmem>>, vector<1x4x128xbf16>
    %127 = vector.shape_cast %126 : vector<1x4x128xbf16> to vector<4x128xbf16>
    %c0_62 = arith.constant 0 : index
    %c0_63 = arith.constant 0 : index
    %c162 = arith.constant 162 : index
    %128 = vector.load %arg1[%c0_62, %c0_63, %c162] : memref<1x4x290xbf16, #tpu.memory_space<vmem>>, vector<1x4x128xbf16>
    %129 = vector.shape_cast %128 : vector<1x4x128xbf16> to vector<4x128xbf16>
    %c0_i32_64 = arith.constant 0 : i32
    %130 = arith.sitofp %c0_i32_64 : i32 to bf16
    %131 = vector.shape_cast %20 : vector<1x128xi1> to vector<1x128xi1>
    %132 = vector.broadcast %131 : vector<1x128xi1> to vector<4x128xi1>
    %133 = vector.broadcast %130 : bf16 to vector<4x128xbf16>
    %134 = arith.select %132, %129, %133 : vector<4x128xi1>, vector<4x128xbf16>
    %135 = tpu.concatenate %93, %95, %102, %109, %111, %118, %125, %127, %134 in 0 : vector<4x128xbf16>, vector<4x128xbf16>, vector<4x128xbf16>, vector<4x128xbf16>, vector<4x128xbf16>, vector<4x128xbf16>, vector<4x128xbf16>, vector<4x128xbf16>, vector<4x128xbf16> -> vector<36x128xbf16>
    %c0_65 = arith.constant 0 : index
    %c0_66 = arith.constant 0 : index
    %136 = vector.load %arg2[%c0_65, %c0_66] : memref<16x36xbf16, #tpu.memory_space<vmem>>, vector<16x36xbf16>
    %cst_67 = arith.constant dense<0.000000e+00> : vector<16x128xf32>
    %137 = tpu.matmul %136, %135, %cst_67 {dimension_numbers = #tpu.dot_dimension_numbers<[1], [0], [0], [1], [0, 0, 1, 1], [], []>} : vector<16x36xbf16>, vector<36x128xbf16>, vector<16x128xf32> -> vector<16x128xf32>
    %c0_68 = arith.constant 0 : index
    %c0_69 = arith.constant 0 : index
    %138 = vector.load %arg3[%c0_68, %c0_69] : memref<16x1xf32, #tpu.memory_space<vmem>>, vector<16x1xf32>
    %139 = vector.broadcast %138 : vector<16x1xf32> to vector<16x128xf32>
    %140 = arith.addf %137, %139 : vector<16x128xf32>
    %cst_70 = arith.constant 0.000000e+00 : f32
    %141 = vector.broadcast %cst_70 : f32 to vector<16x128xf32>
    %142 = arith.maximumf %140, %141 : vector<16x128xf32>
    %c0_71 = arith.constant 0 : index
    %c0_72 = arith.constant 0 : index
    %143 = vector.load %arg4[%c0_71, %c0_72] : memref<3x16xbf16, #tpu.memory_space<vmem>>, vector<3x16xbf16>
    %144 = arith.truncf %142 : vector<16x128xf32> to vector<16x128xbf16>
    %cst_73 = arith.constant dense<0.000000e+00> : vector<3x128xf32>
    %145 = tpu.matmul %143, %144, %cst_73 {dimension_numbers = #tpu.dot_dimension_numbers<[1], [0], [0], [1], [0, 0, 1, 1], [], []>} : vector<3x16xbf16>, vector<16x128xbf16>, vector<3x128xf32> -> vector<3x128xf32>
    %c0_74 = arith.constant 0 : index
    %c0_75 = arith.constant 0 : index
    %146 = vector.load %arg5[%c0_74, %c0_75] : memref<3x1xf32, #tpu.memory_space<vmem>>, vector<3x1xf32>
    %147 = vector.broadcast %146 : vector<3x1xf32> to vector<3x128xf32>
    %148 = arith.addf %145, %147 : vector<3x128xf32>
    %149 = arith.truncf %148 : vector<3x128xf32> to vector<3x128xbf16>
    %c0_76 = arith.constant 0 : index
    %c0_77 = arith.constant 0 : index
    %c128_78 = arith.constant 128 : index
    %150 = vector.load %arg6[%c0_76, %c0_77, %c128_78] : memref<1x3x256xbf16, #tpu.memory_space<vmem>>, vector<1x3x128xbf16>
    %151 = vector.shape_cast %150 : vector<1x3x128xbf16> to vector<3x128xbf16>
    %152 = vector.shape_cast %149 : vector<3x128xbf16> to vector<1x3x128xbf16>
    tpu.vector_store %arg6[%c0_76, %c0_77, %c128_78], %152 {strides = array<i32>} : memref<1x3x256xbf16, #tpu.memory_space<vmem>>, vector<1x3x128xbf16>,
    return
  }
  func.func @transform_0(%arg0: i32) -> (i32, i32, i32) {
    %c0_i32 = arith.constant 0 : i32
    %c0_i32_0 = arith.constant 0 : i32
    %c0_i32_1 = arith.constant 0 : i32
    return %arg0, %c0_i32, %c0_i32_0 : i32, i32, i32
  }
  func.func @transform_1(%arg0: i32) -> (i32, i32) {
    %c0_i32 = arith.constant 0 : i32
    %c0_i32_0 = arith.constant 0 : i32
    %c0_i32_1 = arith.constant 0 : i32
    return %c0_i32, %c0_i32_0 : i32, i32
  }
  func.func @transform_2(%arg0: i32) -> (i32, i32) {
    %c0_i32 = arith.constant 0 : i32
    %c0_i32_0 = arith.constant 0 : i32
    %c0_i32_1 = arith.constant 0 : i32
    return %c0_i32, %c0_i32_0 : i32, i32
  }
  func.func @transform_3(%arg0: i32) -> (i32, i32) {
    %c0_i32 = arith.constant 0 : i32
    %c0_i32_0 = arith.constant 0 : i32
    %c0_i32_1 = arith.constant 0 : i32
    return %c0_i32, %c0_i32_0 : i32, i32
  }
  func.func @transform_4(%arg0: i32) -> (i32, i32) {
    %c0_i32 = arith.constant 0 : i32
    %c0_i32_0 = arith.constant 0 : i32
    %c0_i32_1 = arith.constant 0 : i32
    return %c0_i32, %c0_i32_0 : i32, i32
  }
  func.func @transform_5(%arg0: i32) -> (i32, i32, i32) {
    %c0_i32 = arith.constant 0 : i32
    %c0_i32_0 = arith.constant 0 : i32
    %c0_i32_1 = arith.constant 0 : i32
    return %arg0, %c0_i32, %c0_i32_0 : i32, i32, i32
  }
}

</mosaic_0001>

<llo_original>
// kernel: tpu_custom_call.1
$region0: #{tpu_custom_call.1}
  #allocation0 [shape = 'u32[]', space=smem, size = 0x4, offset = 0x4, fixed_abs, tag = 'smem constant byte address 0x4 - core index']
  #allocation1 [shape = 'u32[144,128]{1,0:T(1,128)}', space=vmem, size = 0x12000, scoped, tag = 'internal scratch']
  %s0 = inlined_call_operand.vmem [shape: bf16[2,4,290], index: 0, kind: input, shape index: {}]
  %s1 = inlined_call_operand.vmem [shape: bf16[16,36], index: 1, kind: input, shape index: {}]
  %s2 = inlined_call_operand.vmem [shape: f32[16,1], index: 2, kind: input, shape index: {}]
  %s3 = inlined_call_operand.vmem [shape: bf16[3,16], index: 3, kind: input, shape index: {}]
  %s4 = inlined_call_operand.vmem [shape: f32[3,1], index: 4, kind: input, shape index: {}]
  %s5 = inlined_call_operand.vmem [shape: bf16[2,3,256], index: 5, kind: output, shape index: {}]
  %s6 = sld [smem:[#allocation0]]
  $region53: #{tpu_custom_call.1} parent=0
    _
  %s8 = ssub.s32 1, %s6
  %s9 = scalar_select 0, %s8, %s6
  loop: start=0, step=1, limit=4
  $region2: #{tpu_custom_call.1} parent=0 // loop_pre_header
    _
  $region3: #{tpu_custom_call.1} parent=0 // loop_header
    %s11 = sphi 0, %s15
    %p12 = scmp.ge.s32.totalorder %s11, 4
    %s21 = sphi 0, %s23
    %s24 = sphi 0, %s21
    %s25 = sphi 0, %s24
    %s41 = sphi 0, %s25
    %s45 = sphi 0, %s45
    %s47 = sphi 0, %s45
    %s48 = sphi 0, %s47
    %s62 = sphi 0, %s48
    %s66 = sphi 0, %s66
    %s68 = sphi 0, %s66
    %s69 = sphi 0, %s68
    %s83 = sphi 0, %s69
    %s87 = sphi 0, %s87
    %s89 = sphi 0, %s87
    %s90 = sphi 0, %s89
    %s104 = sphi 0, %s90
    %s108 = sphi 0, %s108
    %s110 = sphi 0, %s108
    %s111 = sphi 0, %s110
    %s125 = sphi 0, %s111
    %s131 = sphi 0, %s133
    %s134 = sphi 0, %s131
    %s135 = sphi 0, %s134
    %s151 = sphi 0, %s135
  $region4: #{tpu_custom_call.1} parent=0 // loop_header_branch
    %14 = sbr.rel (%p12) target = $region8
  $region5: #{tpu_custom_call.1} parent=0 // loop_body
    %s16 = ssub.s32 %s11, 1
    %s17 = ssub.s32 %s11, 2
    %s18 = sadd.s32 %s11, 1
    %s19 = ssub.s32 %s11, %s18
    %p20 = scmp.eq.s32.totalorder %s19, 0
    %s22 = sadd.s32 %s21, 1
    %s23 = scalar_select %p20, %s21, %s22
    %p26 = pneg %p20
    %p27 = scmp.eq.s32.totalorder %s11, 1
    %p28 = por %p26, %p27
    %p29 = scmp.ne.s32.totalorder %s21, %s24
    %p30 = scmp.eq.s32.totalorder %s11, 0
    %p31 = por %p29, %p30
    %p32 = scmp.ne.s32.totalorder %s21, %s24
    %p33 = scmp.eq.s32.totalorder %s16, 1
    %p34 = por %p32, %p33
    %p35 = scmp.ne.s32.totalorder %s24, %s25
    %p36 = scmp.eq.s32.totalorder %s16, 0
    %p37 = por %p35, %p36
    %p38 = scmp.ne.s32.totalorder %s24, %s25
    %p39 = scmp.eq.s32.totalorder %s17, 1
    %p40 = por %p38, %p39
    %p42 = scmp.ne.s32.totalorder %s25, %s41
    %p43 = scmp.eq.s32.totalorder %s17, 0
    %p44 = por %p42, %p43
    %s46 = sadd.s32 %s45, 1
    %p49 = scmp.eq.s32.totalorder %s11, 1
    %p50 = scmp.ne.s32.totalorder %s45, %s47
    %p51 = scmp.eq.s32.totalorder %s11, 0
    %p52 = por %p50, %p51
    %p53 = scmp.ne.s32.totalorder %s45, %s47
    %p54 = scmp.eq.s32.totalorder %s16, 1
    %p55 = por %p53, %p54
    %p56 = scmp.ne.s32.totalorder %s47, %s48
    %p57 = scmp.eq.s32.totalorder %s16, 0
    %p58 = por %p56, %p57
    %p59 = scmp.ne.s32.totalorder %s47, %s48
    %p60 = scmp.eq.s32.totalorder %s17, 1
    %p61 = por %p59, %p60
    %p63 = scmp.ne.s32.totalorder %s48, %s62
    %p64 = scmp.eq.s32.totalorder %s17, 0
    %p65 = por %p63, %p64
    %s67 = sadd.s32 %s66, 1
    %p70 = scmp.eq.s32.totalorder %s11, 1
    %p71 = scmp.ne.s32.totalorder %s66, %s68
    %p72 = scmp.eq.s32.totalorder %s11, 0
    %p73 = por %p71, %p72
    %p74 = scmp.ne.s32.totalorder %s66, %s68
    %p75 = scmp.eq.s32.totalorder %s16, 1
    %p76 = por %p74, %p75
    %p77 = scmp.ne.s32.totalorder %s68, %s69
    %p78 = scmp.eq.s32.totalorder %s16, 0
    %p79 = por %p77, %p78
    %p80 = scmp.ne.s32.totalorder %s68, %s69
    %p81 = scmp.eq.s32.totalorder %s17, 1
    %p82 = por %p80, %p81
    %p84 = scmp.ne.s32.totalorder %s69, %s83
    %p85 = scmp.eq.s32.totalorder %s17, 0
    %p86 = por %p84, %p85
    %s88 = sadd.s32 %s87, 1
    %p91 = scmp.eq.s32.totalorder %s11, 1
    %p92 = scmp.ne.s32.totalorder %s87, %s89
    %p93 = scmp.eq.s32.totalorder %s11, 0
    %p94 = por %p92, %p93
    %p95 = scmp.ne.s32.totalorder %s87, %s89
    %p96 = scmp.eq.s32.totalorder %s16, 1
    %p97 = por %p95, %p96
    %p98 = scmp.ne.s32.totalorder %s89, %s90
    %p99 = scmp.eq.s32.totalorder %s16, 0
    %p100 = por %p98, %p99
    %p101 = scmp.ne.s32.totalorder %s89, %s90
    %p102 = scmp.eq.s32.totalorder %s17, 1
    %p103 = por %p101, %p102
    %p105 = scmp.ne.s32.totalorder %s90, %s104
    %p106 = scmp.eq.s32.totalorder %s17, 0
    %p107 = por %p105, %p106
    %s109 = sadd.s32 %s108, 1
    %p112 = scmp.eq.s32.totalorder %s11, 1
    %p113 = scmp.ne.s32.totalorder %s108, %s110
    %p114 = scmp.eq.s32.totalorder %s11, 0
    %p115 = por %p113, %p114
    %p116 = scmp.ne.s32.totalorder %s108, %s110
    %p117 = scmp.eq.s32.totalorder %s16, 1
    %p118 = por %p116, %p117
    %p119 = scmp.ne.s32.totalorder %s110, %s111
    %p120 = scmp.eq.s32.totalorder %s16, 0
    %p121 = por %p119, %p120
    %p122 = scmp.ne.s32.totalorder %s110, %s111
    %p123 = scmp.eq.s32.totalorder %s17, 1
    %p124 = por %p122, %p123
    %p126 = scmp.ne.s32.totalorder %s111, %s125
    %p127 = scmp.eq.s32.totalorder %s17, 0
    %p128 = por %p126, %p127
    %s129 = ssub.s32 %s11, %s18
    %p130 = scmp.eq.s32.totalorder %s129, 0
    %s132 = sadd.s32 %s131, 1
    %s133 = scalar_select %p130, %s131, %s132
    %p136 = pneg %p130
    %p137 = scmp.eq.s32.totalorder %s11, 1
    %p138 = por %p136, %p137
    %p139 = scmp.ne.s32.totalorder %s131, %s134
    %p140 = scmp.eq.s32.totalorder %s11, 0
    %p141 = por %p139, %p140
    %p142 = scmp.ne.s32.totalorder %s131, %s134
    %p143 = scmp.eq.s32.totalorder %s16, 1
    %p144 = por %p142, %p143
    %p145 = scmp.ne.s32.totalorder %s134, %s135
    %p146 = scmp.eq.s32.totalorder %s16, 0
    %p147 = por %p145, %p146
    %p148 = scmp.ne.s32.totalorder %s134, %s135
    %p149 = scmp.eq.s32.totalorder %s17, 1
    %p150 = por %p148, %p149
    %p152 = scmp.ne.s32.totalorder %s135, %s151
    %p153 = scmp.eq.s32.totalorder %s17, 0
    %p154 = por %p152, %p153
    %p155 = scmp.le.s32.totalorder 1, %s11
    %p156 = scmp.lt.s32.totalorder %s11, 3
    %p157 = pnand %p155, %p156
    %p158 = pneg %p157
    // Predicated region
    $region9: #{tpu_custom_call.1} parent=5 // pred_check
      _
    $region10: #{tpu_custom_call.1} parent=5 // pred_check_branch
      %160 = sbr.rel (%p157) target = $region12
    $region11: #{tpu_custom_call.1} parent=5 // pred_region
      %s161 = ssub.s32 %s11, 1
      // Predicated region
      $region13: #{tpu_custom_call.1} parent=11 // pred_check
        %p162 = pneg %p58
      $region14: #{tpu_custom_call.1} parent=11 // pred_check_branch
        %164 = sbr.rel (%p162) target = $region16
      $region15: #{tpu_custom_call.1} parent=11 // pred_region
        _
      $region16: #{tpu_custom_call.1} parent=11 // pred_fallthru
        _
      // Predicated region
      $region17: #{tpu_custom_call.1} parent=11 // pred_check
        %p165 = pneg %p79
      $region18: #{tpu_custom_call.1} parent=11 // pred_check_branch
        %167 = sbr.rel (%p165) target = $region20
      $region19: #{tpu_custom_call.1} parent=11 // pred_region
        _
      $region20: #{tpu_custom_call.1} parent=11 // pred_fallthru
        _
      // Predicated region
      $region21: #{tpu_custom_call.1} parent=11 // pred_check
        %p168 = pneg %p100
      $region22: #{tpu_custom_call.1} parent=11 // pred_check_branch
        %170 = sbr.rel (%p168) target = $region24
      $region23: #{tpu_custom_call.1} parent=11 // pred_region
        _
      $region24: #{tpu_custom_call.1} parent=11 // pred_fallthru
        _
      // Predicated region
      $region25: #{tpu_custom_call.1} parent=11 // pred_check
        %p171 = pneg %p121
      $region26: #{tpu_custom_call.1} parent=11 // pred_check_branch
        %173 = sbr.rel (%p171) target = $region28
      $region27: #{tpu_custom_call.1} parent=11 // pred_region
        _
      $region28: #{tpu_custom_call.1} parent=11 // pred_fallthru
        _
    $region12: #{tpu_custom_call.1} parent=5 // pred_fallthru
      _
    %p174 = scmp.lt.s32.totalorder %s11, 2
    // Predicated region
    $region29: #{tpu_custom_call.1} parent=5 // pred_check
      %p175 = pneg %p174
    $region30: #{tpu_custom_call.1} parent=5 // pred_check_branch
      %177 = sbr.rel (%p175) target = $region32
    $region31: #{tpu_custom_call.1} parent=5 // pred_region
      // Predicated region
      $region33: #{tpu_custom_call.1} parent=31 // pred_check
        %p178 = pneg %p31
      $region34: #{tpu_custom_call.1} parent=31 // pred_check_branch
        %180 = sbr.rel (%p178) target = $region36
      $region35: #{tpu_custom_call.1} parent=31 // pred_region
        %p181 = scmp.lt.s32.totalorder %s11, 1
        %s182 = scalar_select %p181, %s11, 1
        %s183 = smul.addr %s182, 3
        %s184 = smul.addr %s183, 2
        %s185 = scalar_lea.vmem %s0, %s184
      $region36: #{tpu_custom_call.1} parent=31 // pred_fallthru
        _
    $region32: #{tpu_custom_call.1} parent=5 // pred_fallthru
      _
    %p186 = scmp.le.s32.totalorder 1, %s11
    %p187 = scmp.lt.s32.totalorder %s11, 3
    %p188 = pnand %p186, %p187
    %p189 = pneg %p188
    // Predicated region
    $region37: #{tpu_custom_call.1} parent=5 // pred_check
      _
    $region38: #{tpu_custom_call.1} parent=5 // pred_check_branch
      %191 = sbr.rel (%p188) target = $region40
    $region39: #{tpu_custom_call.1} parent=5 // pred_region
      %s192 = ssub.s32 %s11, 1
      %p193 = scmp.lt.s32.totalorder %s16, 1
      %s194 = scalar_select %p193, %s16, 1
      %s195 = smul.addr %s194, 3
      %s196 = smul.addr %s195, 2
      %s197 = scalar_lea.vmem %s0, %s196
      %p198 = pneg %p37
      %p199 = pneg %p34
      %p200 = pneg %p58
      %p201 = pneg %p55
      %p202 = pneg %p79
      %p203 = pneg %p76
      %p204 = pneg %p100
      %p205 = pneg %p97
      %p206 = pneg %p121
      %p207 = pneg %p118
      %p208 = pneg %p147
      %p209 = pneg %p144
      %p210 = scmp.lt.s32.totalorder %s16, 1
      %s211 = scalar_select %p210, %s16, 1
      %s212 = smul.addr %s211, 2
      %s213 = smul.addr %s212, 2
      %s214 = scalar_lea.vmem %s5, %s213
      %p215 = scmp.lt.s32.totalorder %s16, 1
      %s216 = scalar_select %p215, %s16, 1
      %s217 = smul.addr %s216, 3
      %s218 = smul.addr %s217, 2
      %s219 = scalar_lea.vmem %s0, %s218
      %p220 = scmp.lt.s32.totalorder %s16, 1
      %s221 = scalar_select %p220, %s16, 1
      %s222 = smul.addr %s221, 2
      %s223 = smul.addr %s222, 2
      %s224 = scalar_lea.vmem %s5, %s223
      %v228 = vlaneseq
      %v229 = vand.u32 %v228, 127
      %vm230 = vcmp.lt.s32.totalorder %v229, 0
      %v231 = vsub.s32 0, %v229
      %v232 = vsel %vm230, %v231, %v229
      %v233 = vshrl.u32 %v232, 4
      %v234 = vand.u32 %v232, 15
      %v235 = vsub.s32 0, %v234
      %v236 = vsel %vm230, %v235, %v234
      %vm237 = vcmp.ne.s32.totalorder %v236, 0
      %vm238 = vcmp.lt.s32.totalorder %v236, 0
      %vm239 = vmand %vm238, %vm237
      %v240 = vadd.s32 %v236, 16
      %v241 = vsel %vm239, %v240, %v236
      %vm242 = vcmp.ne.s32.totalorder %v241, 0
      %vm243 = vcmp.ne.s32.totalorder %v241, 15
      %v244 = vld [vmem:[%s219] sm:$0x3]
      %v245 = vsel %vm242, 1, 0
      %vm246 = vcmp.eq.s32.totalorder %v245, 1
      %v247 = vsel %vm246, 1, 0
      %v248 = vpack.c.b16 %v247, %v247
      %vm249 = vcmp.ne.s16.totalorder %v248, 0
      %v250 = vsel %vm249, %v244, 0
      %v251 = vld [vmem:[%s219] sm:$0xf]
      %v252 = vsel %vm243, 1, 0
      %vm253 = vcmp.eq.s32.totalorder %v252, 1
      %v254 = vsel %vm253, 1, 0
      %v255 = vpack.c.b16 %v254, %v254
      %vm256 = vcmp.ne.s16.totalorder %v255, 0
      %v257 = vsel %vm256, 65537, 0
      %258 = vrot.lane.b32.xlu0 %v257, 2
      %v259 = vpop.permute.xlu0 %258
      %v260 = vrot.slane %v259, 6
      %vm261 = vcmask 15360
      %v262 = vsel %vm261, %v260, %v259
      %vm263 = vcmp.ne.s16.totalorder %v262, 0
      %v264 = vsel %vm263, %v251, 0
      %v265 = vsel %vm249, 65537, 0
      %266 = vrot.lane.b32.xlu0 %v265, 16
      %v267 = vpop.permute.xlu0 %266
      %v268 = vrot.slane %v267, 6
      %vm269 = vcmask 130048
      %v270 = vsel %vm269, %v268, %v267
      %vm271 = vcmp.ne.s16.totalorder %v270, 0
      %v272 = vsel %vm271, %v251, 0
      %273 = vrot.lane.b32.xlu0 %v257, 18
      %v274 = vpop.permute.xlu0 %273
      %v275 = vrot.slane %v274, 6
      %vm276 = vcmask 146432
      %v277 = vsel %vm276, %v275, %v274
      %vm278 = vcmp.ne.s16.totalorder %v277, 0
      %v279 = vsel %vm278, %v251, 0
      %280 = vrot.lane.b32.xlu0 %v265, 32
      %v281 = vpop.permute.xlu0 %280
      %v282 = vrot.slane %v281, 6
      %vm283 = vcmask 261120
      %v284 = vsel %vm283, %v282, %v281
      %vm285 = vcmp.ne.s16.totalorder %v284, 0
      %v286 = vsel %vm285, %v251, 0
      %287 = vrot.lane.b32.xlu0 %v257, 34
      %v288 = vpop.permute.xlu0 %287
      %v289 = vrot.slane %v288, 6
      %vm290 = vcmask 277504
      %v291 = vsel %vm290, %v289, %v288
      %vm292 = vcmp.ne.s16.totalorder %v291, 0
      %v293 = vsel %vm292, %v251, 0
      %v295 = vcombine.low %v251, %v251
      %v297 = vunpack.c.l.s4 1983009808
      %v298 = vunpack.c.0.s8 %v297
      %v299 = vlaneseq
      %v300 = vshrl.u32 %v299, 7
      %v301 = vsub.s32 %v298, %v300
      %v302 = vrot.slane %v295, %v301
      %v304 = vunpack.c.l.s4 1983009808
      %v305 = vunpack.c.0.s8 %v304
      %v306 = vlaneseq
      %v307 = vshrl.u32 %v306, 7
      %v308 = vsub.s32 %v305, %v307
      %v309 = vrot.slane %v251, %v308
      %v310 = vcombine.high %v302, %v302
      %311 = vrot.lane.b32.xlu0 %v302, 127
      %v312 = vpop.permute.xlu0 %311
      %313 = vrot.lane.b32.xlu0 %v310, 127
      %v314 = vpop.permute.xlu0 %313
      %vm315 = vcmask 1039360
      %v316 = vsel %vm315, %v312, %v314
      %v319 = vunpack.c.l.s4 1983009808
      %v320 = vunpack.c.0.s8 %v319
      %v321 = vlaneseq
      %v322 = vshrl.u32 %v321, 7
      %v323 = vsub.s32 %v320, %v322
      %v324 = vrot.slane %v264, %v323
      %v325 = vcombine.low %v324, %v324
      %326 = vrot.lane.b32.xlu0 %v325, 126
      %v327 = vpop.permute.xlu0 %326
      %328 = vrot.lane.b32.xlu0 %v324, 126
      %v329 = vpop.permute.xlu0 %328
      %vm330 = vcmask 1031168
      %v331 = vsel %vm330, %v327, %v329
      %v333 = vcombine.low %v272, %v272
      %v335 = vunpack.c.l.s4 1983009808
      %v336 = vunpack.c.0.s8 %v335
      %v337 = vlaneseq
      %v338 = vshrl.u32 %v337, 7
      %v339 = vsub.s32 %v336, %v338
      %v340 = vrot.slane %v333, %v339
      %v341 = vcombine.low %v340, %v340
      %342 = vrot.lane.b32.xlu0 %v341, 112
      %v343 = vpop.permute.xlu0 %342
      %344 = vrot.lane.b32.xlu0 %v340, 112
      %v345 = vpop.permute.xlu0 %344
      %vm346 = vcmask 916480
      %v347 = vsel %vm346, %v343, %v345
      %v348 = vcombine.high %v309, %v309
      %349 = vrot.lane.b32.xlu0 %v309, 111
      %v350 = vpop.permute.xlu0 %349
      %351 = vrot.lane.b32.xlu0 %v348, 111
      %v352 = vpop.permute.xlu0 %351
      %vm353 = vcmask 908288
      %v354 = vsel %vm353, %v350, %v352
      %v356 = vcombine.low %v279, %v279
      %v358 = vunpack.c.l.s4 1983009808
      %v359 = vunpack.c.0.s8 %v358
      %v360 = vlaneseq
      %v361 = vshrl.u32 %v360, 7
      %v362 = vsub.s32 %v359, %v361
      %v363 = vrot.slane %v356, %v362
      %v364 = vcombine.high %v363, %v363
      %365 = vrot.lane.b32.xlu0 %v363, 110
      %v366 = vpop.permute.xlu0 %365
      %367 = vrot.lane.b32.xlu0 %v364, 110
      %v368 = vpop.permute.xlu0 %367
      %vm369 = vcmask 900096
      %v370 = vsel %vm369, %v366, %v368
      %v373 = vunpack.c.l.s4 1983009808
      %v374 = vunpack.c.0.s8 %v373
      %v375 = vlaneseq
      %v376 = vshrl.u32 %v375, 7
      %v377 = vsub.s32 %v374, %v376
      %v378 = vrot.slane %v286, %v377
      %v379 = vcombine.low %v378, %v378
      %380 = vrot.lane.b32.xlu0 %v379, 96
      %v381 = vpop.permute.xlu0 %380
      %382 = vrot.lane.b32.xlu0 %v378, 96
      %v383 = vpop.permute.xlu0 %382
      %vm384 = vcmask 785408
      %v385 = vsel %vm384, %v381, %v383
      %v386 = vcombine.low %v302, %v302
      %387 = vrot.lane.b32.xlu0 %v386, 95
      %v388 = vpop.permute.xlu0 %387
      %389 = vrot.lane.b32.xlu0 %v302, 95
      %v390 = vpop.permute.xlu0 %389
      %vm391 = vcmask 777216
      %v392 = vsel %vm391, %v388, %v390
      %v395 = vunpack.c.l.s4 1983009808
      %v396 = vunpack.c.0.s8 %v395
      %v397 = vlaneseq
      %v398 = vshrl.u32 %v397, 7
      %v399 = vsub.s32 %v396, %v398
      %v400 = vrot.slane %v293, %v399
      %v401 = vcombine.high %v400, %v400
      %402 = vrot.lane.b32.xlu0 %v400, 94
      %v403 = vpop.permute.xlu0 %402
      %404 = vrot.lane.b32.xlu0 %v401, 94
      %v405 = vpop.permute.xlu0 %404
      %vm406 = vcmask 769024
      %v407 = vsel %vm406, %v403, %v405
      %vm408 = vcmask 1041408
      %v411 = vsel %vm408, %v250, %v316
      %vm412 = vcmask 1043456
      %v414 = vsel %vm412, %v411, %v331
      %vm415 = vcmask 1045504
      %v417 = vsel %vm415, %v414, %v347
      %v421 = vsel %vm408, %v354, %v370
      %v423 = vsel %vm412, %v421, %v385
      %v425 = vsel %vm415, %v423, %v392
      %v427 = vld [vmem:[%s1] sm:$0xf]
      %v428 = vld [vmem:[%s1 + $0x4] sm:$0xf]
      %v429 = vld [vmem:[%s2] sm:$0xff]
      %v430 = vld [vmem:[%s2 + $0x8] sm:$0xff]
      %432 = vset.pattern.permute.xlu0 0
      %433 = vperm.xlu0 %432, %v429
      %v434 = vpop.permute.xlu0 %433
      %437 = vset.pattern.permute.xlu0 0
      %438 = vperm.xlu0 %437, %v430
      %v439 = vpop.permute.xlu0 %438
      %v443 = vunpack.c.l.b16 %v427
      %v444 = vunpack.c.l.b16 %v428
      %v445 = vpack.c.b16 %v444, %v443
      %vm446 = vcmask 293888
      %v448 = vsel %vm446, %v445, 0
      %v451 = vsel %vm408, %v407, 0
      %453 = vmatprep.subr.bf16.mxu0 0
      %454 = vmatpush1.bf16.msra.mxu0 0
      %455 = vmatprep.subr.bf16.mxu0 0
      %456 = vmatpush1.bf16.msra.mxu0 0
      %457 = vmatprep.subr.bf16.mxu0 0
      %458 = vmatpush1.bf16.msra.mxu0 0
      %459 = vmatprep.subr.bf16.mxu0 0
      %460 = vmatpush1.bf16.msra.mxu0 0
      %461 = vmatprep.subr.bf16.mxu0 0
      %462 = vmatpush1.bf16.msra.mxu0 0
      %463 = vmatprep.subr.bf16.mxu0 0
      %464 = vmatpush1.bf16.msra.mxu0 %v451
      %465 = vmatprep.subr.bf16.mxu0 0
      %466 = vmatpush1.bf16.msra.mxu0 %v425
      %467 = vmatprep.subr.bf16.mxu0 0
      %468 = vmatpush1.bf16.msra.mxu0 %v417
      %469 = vmatprep.subr.bf16.mxu0 0
      %470 = vmatpush2.bf16.msra.mxu0 0
      %471 = vmatprep.subr.bf16.mxu0 0
      %472 = vmatpush2.bf16.msra.mxu0 0
      %473 = vmatprep.subr.bf16.mxu0 0
      %474 = vmatpush2.bf16.msra.mxu0 0
      %475 = vmatprep.subr.bf16.mxu0 0
      %476 = vmatpush2.bf16.msra.mxu0 0
      %477 = vmatprep.subr.bf16.mxu0 0
      %478 = vmatpush2.bf16.msra.mxu0 0
      %479 = vmatprep.subr.bf16.mxu0 0
      %480 = vmatpush2.bf16.msra.mxu0 0
      %481 = vmatprep.subr.bf16.mxu0 0
      %482 = vmatpush2.bf16.msra.mxu0 0
      %483 = vmatprep.subr.bf16.mxu0 0
      %484 = vmatpush2.bf16.msra.mxu0 0
      %485 = vmatprep.mubr.bf16.mxu0 0
      %486 = vmatmul.mubr.bf16.gmra.mxu0 %v448
      %v487 = vpop.f32.mrf.mxu0
      %v488 = vadd.f32 %v434, %v487
      %v489 = vpop.f32.mrf.mxu0
      %v490 = vpop.f32.mrf.mxu0
      %v491 = vadd.f32 %v439, %v490
      %v492 = vpop.f32.mrf.mxu0
      %493 = vdwg.mxu0
      %v494 = vmax.f32 %v488, 0.0
      %v495 = vmax.f32 %v491, 0.0
      %v496 = vld [vmem:[%s3] sm:$0x3]
      %v497 = vpack.c.bf16 %v495, %v494
      %v498 = vld [vmem:[%s4] sm:$0x7]
      %500 = vset.pattern.permute.xlu0 0
      %501 = vperm.xlu0 %500, %v498
      %v502 = vpop.permute.xlu0 %501
      %vm504 = vcmask 130048
      %v506 = vsel %vm504, %v496, 0
      %508 = vmatprep.subr.bf16.mxu0 0
      %509 = vmatpush1.bf16.msra.mxu0 0
      %510 = vmatprep.subr.bf16.mxu0 0
      %511 = vmatpush1.bf16.msra.mxu0 0
      %512 = vmatprep.subr.bf16.mxu0 0
      %513 = vmatpush1.bf16.msra.mxu0 0
      %514 = vmatprep.subr.bf16.mxu0 0
      %515 = vmatpush1.bf16.msra.mxu0 0
      %516 = vmatprep.subr.bf16.mxu0 0
      %517 = vmatpush1.bf16.msra.mxu0 0
      %518 = vmatprep.subr.bf16.mxu0 0
      %519 = vmatpush1.bf16.msra.mxu0 0
      %520 = vmatprep.subr.bf16.mxu0 0
      %521 = vmatpush1.bf16.msra.mxu0 0
      %522 = vmatprep.subr.bf16.mxu0 0
      %523 = vmatpush1.bf16.msra.mxu0 %v497
      %524 = vmatprep.subr.bf16.mxu0 0
      %525 = vmatpush2.bf16.msra.mxu0 0
      %526 = vmatprep.subr.bf16.mxu0 0
      %527 = vmatpush2.bf16.msra.mxu0 0
      %528 = vmatprep.subr.bf16.mxu0 0
      %529 = vmatpush2.bf16.msra.mxu0 0
      %530 = vmatprep.subr.bf16.mxu0 0
      %531 = vmatpush2.bf16.msra.mxu0 0
      %532 = vmatprep.subr.bf16.mxu0 0
      %533 = vmatpush2.bf16.msra.mxu0 0
      %534 = vmatprep.subr.bf16.mxu0 0
      %535 = vmatpush2.bf16.msra.mxu0 0
      %536 = vmatprep.subr.bf16.mxu0 0
      %537 = vmatpush2.bf16.msra.mxu0 0
      %538 = vmatprep.subr.bf16.mxu0 0
      %539 = vmatpush2.bf16.msra.mxu0 0
      %540 = vmatprep.mubr.bf16.mxu0 0
      %541 = vmatmul.mubr.bf16.gmra.mxu0 %v506
      %v542 = vpop.f32.mrf.mxu0
      %v543 = vadd.f32 %v502, %v542
      %v544 = vpop.f32.mrf.mxu0
      %v545 = vpop.f32.mrf.mxu0
      %v546 = vpop.f32.mrf.mxu0
      %547 = vdwg.mxu0
      %v548 = vpack.c.bf16 %v543, %v543
      %vm549 = vcmask 1041408
      %vm550 = vsmask.f32 1280
      %vm551 = vmand %vm549, %vm550
      %v552 = vld [vmem:[%s224] sm:$0x3]
      %v553 = vsel %vm551, %v548, %v552
      %554 = vst [vmem:[%s224] sm:$0x3] %v553
      %v555 = vld [vmem:[%s219 + $0x2] sm:$0x3]
      %v556 = vsel %vm249, %v555, 0
      %v557 = vld [vmem:[%s219 + $0x2] sm:$0xf]
      %v558 = vsel %vm263, %v557, 0
      %v559 = vsel %vm271, %v557, 0
      %v560 = vsel %vm278, %v557, 0
      %v561 = vsel %vm285, %v557, 0
      %v562 = vsel %vm292, %v557, 0
      %v564 = vcombine.low %v557, %v557
      %v566 = vunpack.c.l.s4 1983009808
      %v567 = vunpack.c.0.s8 %v566
      %v568 = vlaneseq
      %v569 = vshrl.u32 %v568, 7
      %v570 = vsub.s32 %v567, %v569
      %v571 = vrot.slane %v564, %v570
      %v573 = vunpack.c.l.s4 1983009808
      %v574 = vunpack.c.0.s8 %v573
      %v575 = vlaneseq
      %v576 = vshrl.u32 %v575, 7
      %v577 = vsub.s32 %v574, %v576
      %v578 = vrot.slane %v557, %v577
      %v579 = vcombine.high %v571, %v571
      %580 = vrot.lane.b32.xlu0 %v571, 127
      %v581 = vpop.permute.xlu0 %580
      %582 = vrot.lane.b32.xlu0 %v579, 127
      %v583 = vpop.permute.xlu0 %582
      %v584 = vsel %vm315, %v581, %v583
      %v587 = vunpack.c.l.s4 1983009808
      %v588 = vunpack.c.0.s8 %v587
      %v589 = vlaneseq
      %v590 = vshrl.u32 %v589, 7
      %v591 = vsub.s32 %v588, %v590
      %v592 = vrot.slane %v558, %v591
      %v593 = vcombine.low %v592, %v592
      %594 = vrot.lane.b32.xlu0 %v593, 126
      %v595 = vpop.permute.xlu0 %594
      %596 = vrot.lane.b32.xlu0 %v592, 126
      %v597 = vpop.permute.xlu0 %596
      %v598 = vsel %vm330, %v595, %v597
      %v600 = vcombine.low %v559, %v559
      %v602 = vunpack.c.l.s4 1983009808
      %v603 = vunpack.c.0.s8 %v602
      %v604 = vlaneseq
      %v605 = vshrl.u32 %v604, 7
      %v606 = vsub.s32 %v603, %v605
      %v607 = vrot.slane %v600, %v606
      %v608 = vcombine.low %v607, %v607
      %609 = vrot.lane.b32.xlu0 %v608, 112
      %v610 = vpop.permute.xlu0 %609
      %611 = vrot.lane.b32.xlu0 %v607, 112
      %v612 = vpop.permute.xlu0 %611
      %v613 = vsel %vm346, %v610, %v612
      %v614 = vcombine.high %v578, %v578
      %615 = vrot.lane.b32.xlu0 %v578, 111
      %v616 = vpop.permute.xlu0 %615
      %617 = vrot.lane.b32.xlu0 %v614, 111
      %v618 = vpop.permute.xlu0 %617
      %v619 = vsel %vm353, %v616, %v618
      %v621 = vcombine.low %v560, %v560
      %v623 = vunpack.c.l.s4 1983009808
      %v624 = vunpack.c.0.s8 %v623
      %v625 = vlaneseq
      %v626 = vshrl.u32 %v625, 7
      %v627 = vsub.s32 %v624, %v626
      %v628 = vrot.slane %v621, %v627
      %v629 = vcombine.high %v628, %v628
      %630 = vrot.lane.b32.xlu0 %v628, 110
      %v631 = vpop.permute.xlu0 %630
      %632 = vrot.lane.b32.xlu0 %v629, 110
      %v633 = vpop.permute.xlu0 %632
      %v634 = vsel %vm369, %v631, %v633
      %v637 = vunpack.c.l.s4 1983009808
      %v638 = vunpack.c.0.s8 %v637
      %v639 = vlaneseq
      %v640 = vshrl.u32 %v639, 7
      %v641 = vsub.s32 %v638, %v640
      %v642 = vrot.slane %v561, %v641
      %v643 = vcombine.low %v642, %v642
      %644 = vrot.lane.b32.xlu0 %v643, 96
      %v645 = vpop.permute.xlu0 %644
      %646 = vrot.lane.b32.xlu0 %v642, 96
      %v647 = vpop.permute.xlu0 %646
      %v648 = vsel %vm384, %v645, %v647
      %v649 = vcombine.low %v571, %v571
      %650 = vrot.lane.b32.xlu0 %v649, 95
      %v651 = vpop.permute.xlu0 %650
      %652 = vrot.lane.b32.xlu0 %v571, 95
      %v653 = vpop.permute.xlu0 %652
      %v654 = vsel %vm391, %v651, %v653
      %v657 = vunpack.c.l.s4 1983009808
      %v658 = vunpack.c.0.s8 %v657
      %v659 = vlaneseq
      %v660 = vshrl.u32 %v659, 7
      %v661 = vsub.s32 %v658, %v660
      %v662 = vrot.slane %v562, %v661
      %v663 = vcombine.high %v662, %v662
      %664 = vrot.lane.b32.xlu0 %v662, 94
      %v665 = vpop.permute.xlu0 %664
      %666 = vrot.lane.b32.xlu0 %v663, 94
      %v667 = vpop.permute.xlu0 %666
      %v668 = vsel %vm406, %v665, %v667
      %v671 = vsel %vm408, %v556, %v584
      %v673 = vsel %vm412, %v671, %v598
      %v675 = vsel %vm415, %v673, %v613
      %v679 = vsel %vm408, %v619, %v634
      %v681 = vsel %vm412, %v679, %v648
      %v683 = vsel %vm415, %v681, %v654
      %v685 = vld [vmem:[%s1] sm:$0xf]
      %v686 = vld [vmem:[%s1 + $0x4] sm:$0xf]
      %v687 = vld [vmem:[%s2] sm:$0xff]
      %v688 = vld [vmem:[%s2 + $0x8] sm:$0xff]
      %690 = vset.pattern.permute.xlu0 0
      %691 = vperm.xlu0 %690, %v687
      %v692 = vpop.permute.xlu0 %691
      %695 = vset.pattern.permute.xlu0 0
      %696 = vperm.xlu0 %695, %v688
      %v697 = vpop.permute.xlu0 %696
      %v701 = vunpack.c.l.b16 %v685
      %v702 = vunpack.c.l.b16 %v686
      %v703 = vpack.c.b16 %v702, %v701
      %v705 = vsel %vm446, %v703, 0
      %v708 = vsel %vm408, %v668, 0
      %710 = vmatprep.subr.bf16.mxu0 0
      %711 = vmatpush1.bf16.msra.mxu0 0
      %712 = vmatprep.subr.bf16.mxu0 0
      %713 = vmatpush1.bf16.msra.mxu0 0
      %714 = vmatprep.subr.bf16.mxu0 0
      %715 = vmatpush1.bf16.msra.mxu0 0
      %716 = vmatprep.subr.bf16.mxu0 0
      %717 = vmatpush1.bf16.msra.mxu0 0
      %718 = vmatprep.subr.bf16.mxu0 0
      %719 = vmatpush1.bf16.msra.mxu0 0
      %720 = vmatprep.subr.bf16.mxu0 0
      %721 = vmatpush1.bf16.msra.mxu0 %v708
      %722 = vmatprep.subr.bf16.mxu0 0
      %723 = vmatpush1.bf16.msra.mxu0 %v683
      %724 = vmatprep.subr.bf16.mxu0 0
      %725 = vmatpush1.bf16.msra.mxu0 %v675
      %726 = vmatprep.subr.bf16.mxu0 0
      %727 = vmatpush2.bf16.msra.mxu0 0
      %728 = vmatprep.subr.bf16.mxu0 0
      %729 = vmatpush2.bf16.msra.mxu0 0
      %730 = vmatprep.subr.bf16.mxu0 0
      %731 = vmatpush2.bf16.msra.mxu0 0
      %732 = vmatprep.subr.bf16.mxu0 0
      %733 = vmatpush2.bf16.msra.mxu0 0
      %734 = vmatprep.subr.bf16.mxu0 0
      %735 = vmatpush2.bf16.msra.mxu0 0
      %736 = vmatprep.subr.bf16.mxu0 0
      %737 = vmatpush2.bf16.msra.mxu0 0
      %738 = vmatprep.subr.bf16.mxu0 0
      %739 = vmatpush2.bf16.msra.mxu0 0
      %740 = vmatprep.subr.bf16.mxu0 0
      %741 = vmatpush2.bf16.msra.mxu0 0
      %742 = vmatprep.mubr.bf16.mxu0 0
      %743 = vmatmul.mubr.bf16.gmra.mxu0 %v705
      %v744 = vpop.f32.mrf.mxu0
      %v745 = vadd.f32 %v692, %v744
      %v746 = vpop.f32.mrf.mxu0
      %v747 = vpop.f32.mrf.mxu0
      %v748 = vadd.f32 %v697, %v747
      %v749 = vpop.f32.mrf.mxu0
      %750 = vdwg.mxu0
      %v751 = vmax.f32 %v745, 0.0
      %v752 = vmax.f32 %v748, 0.0
      %v753 = vld [vmem:[%s3] sm:$0x3]
      %v754 = vpack.c.bf16 %v752, %v751
      %v755 = vld [vmem:[%s4] sm:$0x7]
      %757 = vset.pattern.permute.xlu0 0
      %758 = vperm.xlu0 %757, %v755
      %v759 = vpop.permute.xlu0 %758
      %v762 = vsel %vm504, %v753, 0
      %764 = vmatprep.subr.bf16.mxu0 0
      %765 = vmatpush1.bf16.msra.mxu0 0
      %766 = vmatprep.subr.bf16.mxu0 0
      %767 = vmatpush1.bf16.msra.mxu0 0
      %768 = vmatprep.subr.bf16.mxu0 0
      %769 = vmatpush1.bf16.msra.mxu0 0
      %770 = vmatprep.subr.bf16.mxu0 0
      %771 = vmatpush1.bf16.msra.mxu0 0
      %772 = vmatprep.subr.bf16.mxu0 0
      %773 = vmatpush1.bf16.msra.mxu0 0
      %774 = vmatprep.subr.bf16.mxu0 0
      %775 = vmatpush1.bf16.msra.mxu0 0
      %776 = vmatprep.subr.bf16.mxu0 0
      %777 = vmatpush1.bf16.msra.mxu0 0
      %778 = vmatprep.subr.bf16.mxu0 0
      %779 = vmatpush1.bf16.msra.mxu0 %v754
      %780 = vmatprep.subr.bf16.mxu0 0
      %781 = vmatpush2.bf16.msra.mxu0 0
      %782 = vmatprep.subr.bf16.mxu0 0
      %783 = vmatpush2.bf16.msra.mxu0 0
      %784 = vmatprep.subr.bf16.mxu0 0
      %785 = vmatpush2.bf16.msra.mxu0 0
      %786 = vmatprep.subr.bf16.mxu0 0
      %787 = vmatpush2.bf16.msra.mxu0 0
      %788 = vmatprep.subr.bf16.mxu0 0
      %789 = vmatpush2.bf16.msra.mxu0 0
      %790 = vmatprep.subr.bf16.mxu0 0
      %791 = vmatpush2.bf16.msra.mxu0 0
      %792 = vmatprep.subr.bf16.mxu0 0
      %793 = vmatpush2.bf16.msra.mxu0 0
      %794 = vmatprep.subr.bf16.mxu0 0
      %795 = vmatpush2.bf16.msra.mxu0 0
      %796 = vmatprep.mubr.bf16.mxu0 0
      %797 = vmatmul.mubr.bf16.gmra.mxu0 %v762
      %v798 = vpop.f32.mrf.mxu0
      %v799 = vadd.f32 %v759, %v798
      %v800 = vpop.f32.mrf.mxu0
      %v801 = vpop.f32.mrf.mxu0
      %v802 = vpop.f32.mrf.mxu0
      %803 = vdwg.mxu0
      %v804 = vpack.c.bf16 %v799, %v799
      %v805 = vld [vmem:[%s224 + $0x2] sm:$0x3]
      %v806 = vsel %vm551, %v804, %v805
      %807 = vst [vmem:[%s224 + $0x2] sm:$0x3] %v806
      %p808 = scmp.lt.s32.totalorder %s16, 1
      %s809 = scalar_select %p808, %s16, 1
      %s810 = smul.addr %s809, 2
      %s811 = smul.addr %s810, 2
      %s812 = scalar_lea.vmem %s5, %s811
      // Predicated region
      $region41: #{tpu_custom_call.1} parent=39 // pred_check
        %p813 = pneg %p144
      $region42: #{tpu_custom_call.1} parent=39 // pred_check_branch
        %815 = sbr.rel (%p813) target = $region44
      $region43: #{tpu_custom_call.1} parent=39 // pred_region
        _
      $region44: #{tpu_custom_call.1} parent=39 // pred_fallthru
        _
    $region40: #{tpu_custom_call.1} parent=5 // pred_fallthru
      _
    %p816 = scmp.le.s32.totalorder 2, %s11
    // Predicated region
    $region45: #{tpu_custom_call.1} parent=5 // pred_check
      %p817 = pneg %p816
    $region46: #{tpu_custom_call.1} parent=5 // pred_check_branch
      %819 = sbr.rel (%p817) target = $region48
    $region47: #{tpu_custom_call.1} parent=5 // pred_region
      %s820 = ssub.s32 %s11, 2
      // Predicated region
      $region49: #{tpu_custom_call.1} parent=47 // pred_check
        %p821 = pneg %p150
      $region50: #{tpu_custom_call.1} parent=47 // pred_check_branch
        %823 = sbr.rel (%p821) target = $region52
      $region51: #{tpu_custom_call.1} parent=47 // pred_region
        %p824 = scmp.lt.s32.totalorder %s17, 1
        %s825 = scalar_select %p824, %s17, 1
        %s826 = smul.addr %s825, 2
        %s827 = smul.addr %s826, 2
        %s828 = scalar_lea.vmem %s5, %s827
      $region52: #{tpu_custom_call.1} parent=47 // pred_fallthru
        _
    $region48: #{tpu_custom_call.1} parent=5 // pred_fallthru
      _
  $region6: #{tpu_custom_call.1} parent=0 // loop_footer
    %s15 = sadd.s32 1, %s11
  $region7: #{tpu_custom_call.1} parent=0 // loop_footer_branch
    %10 = sbr.rel target = $region3
  $region8: #{tpu_custom_call.1} parent=0 // loop_exit
    _

</llo_original>
